<compile_context>
chip_gen: v7x
topology: tpu7x:2x2x1
jax: 0.10.0
libtpu: 0.0.40
codegen_flags: <defaults>
</compile_context>

<pallas_src>
import jax
import jax.numpy as jnp
from jax.experimental import pallas as pl
from jax.experimental.pallas import tpu as pltpu


def _qnet_kernel(x_ref, w1_ref, b1_ref, w2_ref, b2_ref, out_ref):
    # x_ref:  (tile_b, D_in)
    # w1_ref: (D_in, H)     b1_ref: (1, H)
    # w2_ref: (H, O_pad)    b2_ref: (1, O_pad)   -- lane-dense padded (O_pad % 128 == 0)
    # out_ref:(tile_b, O_pad)
    h = jnp.dot(x_ref[...], w1_ref[...], preferred_element_type=jnp.float32)
    h = jnp.maximum(h + b1_ref[...], 0.0)                      # bias + relu on VPU
    o = jnp.dot(h, w2_ref[...], preferred_element_type=jnp.float32) + b2_ref[...]
    out_ref[...] = o.astype(out_ref.dtype)                     # full-lane unmasked store


def prepare_params(w1, b1, w2, b2, *, lane_pad=128):
    """Build kernel-ready parameters ONCE (cache across forward calls).

    w1: [D_in, H] (transposed vs torch), b1: [H]
    w2: [H, O]    (transposed vs torch), b2: [O]

    Returns a dict of arrays:
      w1 [D_in, H], b1 [1, H], w2 [H, O_pad], b2 [1, O_pad]
    with O_pad rounded up to a multiple of `lane_pad` (zero padding) so the
    kernel's output store is lane-dense.
    """
    d_in, H = w1.shape
    O = w2.shape[1]
    O_pad = -(-O // lane_pad) * lane_pad
    w2p = jnp.zeros((H, O_pad), w2.dtype).at[:, :O].set(w2)
    b2p = jnp.zeros((1, O_pad), b2.dtype).at[:, :O].set(b2)
    return {"w1": w1, "b1": b1.reshape(1, H), "w2": w2p, "b2": b2p}


def _pick_tile_b(B, cap=8192):
    """Whole batch in one grid step when it comfortably fits VMEM; otherwise
    the largest multiple-of-8 tile <= cap that divides B."""
    if B <= cap:
        return B
    for t in range(cap - cap % 8, 7, -8):
        if B % t == 0:
            return t
    return B  # ragged huge batch: whole-batch fallback (caller should pad B)


def linear_qnet_forward(x, params, out_features, *, tile_b=None):
    """Forward pass of Linear_QNet: relu(x @ w1 + b1) @ w2 + b2.

    x: [B, D_in]; params from prepare_params(); out_features: static int (O).
    Returns [B, out_features].
    """
    w1, b1, w2, b2 = params["w1"], params["b1"], params["w2"], params["b2"]
    B, d_in = x.shape
    H = w1.shape[1]
    O_pad = w2.shape[1]

    if tile_b is None:
        tile_b = _pick_tile_b(B)
    if B % tile_b != 0 or (tile_b != B and tile_b % 8 != 0):
        tile_b = B  # safe whole-batch fallback
    grid = (B // tile_b,)

    cost = pl.CostEstimate(
        flops=2 * B * (d_in * H + H * O_pad),
        transcendentals=0,
        bytes_accessed=4 * (B * d_in + d_in * H + H + H * O_pad + O_pad + B * O_pad),
    )

    q_padded = pl.pallas_call(
        _qnet_kernel,
        out_shape=jax.ShapeDtypeStruct((B, O_pad), x.dtype),
        grid=grid,
        in_specs=[
            # x tile marches along the batch; weights/biases use constant
            # block indices so they are DMA'd once and stay VMEM-resident.
            pl.BlockSpec((tile_b, d_in), lambda i: (i, 0)),
            pl.BlockSpec((d_in, H), lambda i: (0, 0)),
            pl.BlockSpec((1, H), lambda i: (0, 0)),
            pl.BlockSpec((H, O_pad), lambda i: (0, 0)),
            pl.BlockSpec((1, O_pad), lambda i: (0, 0)),
        ],
        out_specs=pl.BlockSpec((tile_b, O_pad), lambda i: (i, 0)),
        compiler_params=pltpu.CompilerParams(
            dimension_semantics=("parallel",)),  # lets v7x megacore shard if grid > 1
        cost_estimate=cost,
    )(x, w1, b1, w2, b2)

    # Drop the lane padding; this is the module's [B, O] Q-value output.
    return q_padded[:, :out_features]


def init_linear_params(key, in_features, out_features, dtype=jnp.float32):
    """Mirror torch.nn.Linear default init (uniform +/- 1/sqrt(fan_in)).

    Returns W as [in_features, out_features] (transposed vs torch) and b [out_features].
    """
    k_w, k_b = jax.random.split(key)
    bound = 1.0 / jnp.sqrt(jnp.asarray(in_features, dtype))
    w = jax.random.uniform(k_w, (in_features, out_features), dtype,
                           minval=-bound, maxval=bound)
    b = jax.random.uniform(k_b, (out_features,), dtype,
                           minval=-bound, maxval=bound)
    return w, b


if __name__ == "__main__":
    # Snake-game Q-net sizes: 11 -> 32 -> 3, batch of 256 states.
    input_size, hidden_size, output_size = 11, 32, 3
    batch = 256

    key = jax.random.PRNGKey(0)
    k_x, k_l1, k_l2 = jax.random.split(key, 3)

    x = jax.random.normal(k_x, (batch, input_size), jnp.float32)
    w1, b1 = init_linear_params(k_l1, input_size, hidden_size)
    w2, b2 = init_linear_params(k_l2, hidden_size, output_size)

    # Built once, reused for every forward call (not in the per-call path).
    params = prepare_params(w1, b1, w2, b2)

    fwd = jax.jit(lambda xb, p: linear_qnet_forward(xb, p, output_size))
    out = jax.block_until_ready(fwd(x, params))

    # Pure-JAX reference of the same forward pass.
    ref = jnp.maximum(x @ w1 + b1, 0.0) @ w2 + b2
    assert out.shape == (batch, output_size)
    assert jnp.allclose(out, ref, atol=1e-5, rtol=1e-5)

    # TODO(synk): Linear_QNet.save (torch.save checkpointing) is host-side I/O,
    # not a kernel op; intentionally not implemented.
    print("KERNEL_OK")
</pallas_src>

<mosaic_0001>
module attributes {stable_mosaic.version = 11 : i64} {
  func.func @_qnet_kernel(%arg0: i32, %arg1: memref<256x11xf32, #tpu.memory_space<vmem>>, %arg2: memref<11x32xf32, #tpu.memory_space<vmem>>, %arg3: memref<1x32xf32, #tpu.memory_space<vmem>>, %arg4: memref<32x128xf32, #tpu.memory_space<vmem>>, %arg5: memref<1x128xf32, #tpu.memory_space<vmem>>, %arg6: memref<256x128xf32, #tpu.memory_space<vmem>>) attributes {dimension_semantics = [#tpu.dimension_semantics<parallel>], iteration_bounds = array<i64: 1>, scalar_prefetch = 0 : i64, scratch_operands = 0 : i64, tpu.core_type = #tpu.core_type<tc>, window_params = [{transform_indices = @transform_0, window_bounds = array<i64: 256, 11>}, {pipeline_mode = #tpu.pipeline_mode<synchronous>, transform_indices = @transform_1, window_bounds = array<i64: 11, 32>}, {pipeline_mode = #tpu.pipeline_mode<synchronous>, transform_indices = @transform_2, window_bounds = array<i64: 1, 32>}, {pipeline_mode = #tpu.pipeline_mode<synchronous>, transform_indices = @transform_3, window_bounds = array<i64: 32, 128>}, {pipeline_mode = #tpu.pipeline_mode<synchronous>, transform_indices = @transform_4, window_bounds = array<i64: 1, 128>}, {transform_indices = @transform_5, window_bounds = array<i64: 256, 128>}]} {
    %c0 = arith.constant 0 : index
    %c0_0 = arith.constant 0 : index
    %0 = vector.load %arg1[%c0, %c0_0] : memref<256x11xf32, #tpu.memory_space<vmem>>, vector<256x11xf32>
    %c0_1 = arith.constant 0 : index
    %c0_2 = arith.constant 0 : index
    %1 = vector.load %arg2[%c0_1, %c0_2] : memref<11x32xf32, #tpu.memory_space<vmem>>, vector<11x32xf32>
    %cst = arith.constant dense<0.000000e+00> : vector<256x32xf32>
    %2 = tpu.matmul %0, %1, %cst {dimension_numbers = #tpu.dot_dimension_numbers<[1], [0], [0], [1], [0, 0, 1, 1], [], []>} : vector<256x11xf32>, vector<11x32xf32>, vector<256x32xf32> -> vector<256x32xf32>
    %c0_3 = arith.constant 0 : index
    %c0_4 = arith.constant 0 : index
    %3 = vector.load %arg3[%c0_3, %c0_4] : memref<1x32xf32, #tpu.memory_space<vmem>>, vector<1x32xf32>
    %4 = vector.broadcast %3 : vector<1x32xf32> to vector<256x32xf32>
    %5 = arith.addf %2, %4 : vector<256x32xf32>
    %cst_5 = arith.constant 0.000000e+00 : f32
    %6 = vector.broadcast %cst_5 : f32 to vector<256x32xf32>
    %7 = arith.maximumf %5, %6 : vector<256x32xf32>
    %c0_6 = arith.constant 0 : index
    %c0_7 = arith.constant 0 : index
    %8 = vector.load %arg4[%c0_6, %c0_7] : memref<32x128xf32, #tpu.memory_space<vmem>>, vector<32x128xf32>
    %cst_8 = arith.constant dense<0.000000e+00> : vector<256x128xf32>
    %9 = tpu.matmul %7, %8, %cst_8 {dimension_numbers = #tpu.dot_dimension_numbers<[1], [0], [0], [1], [0, 0, 1, 1], [], []>} : vector<256x32xf32>, vector<32x128xf32>, vector<256x128xf32> -> vector<256x128xf32>
    %c0_9 = arith.constant 0 : index
    %c0_10 = arith.constant 0 : index
    %10 = vector.load %arg5[%c0_9, %c0_10] : memref<1x128xf32, #tpu.memory_space<vmem>>, vector<1x128xf32>
    %11 = vector.broadcast %10 : vector<1x128xf32> to vector<256x128xf32>
    %12 = arith.addf %9, %11 : vector<256x128xf32>
    %c0_11 = arith.constant 0 : index
    %c0_12 = arith.constant 0 : index
    %13 = vector.load %arg6[%c0_11, %c0_12] : memref<256x128xf32, #tpu.memory_space<vmem>>, vector<256x128xf32>
    tpu.vector_store %arg6[%c0_11, %c0_12], %12 {strides = array<i32>} : memref<256x128xf32, #tpu.memory_space<vmem>>, vector<256x128xf32>,
    return
  }
  func.func @transform_0(%arg0: i32) -> (i32, i32) {
    %c0_i32 = arith.constant 0 : i32
    %c0_i32_0 = arith.constant 0 : i32
    return %arg0, %c0_i32 : i32, i32
  }
  func.func @transform_1(%arg0: i32) -> (i32, i32) {
    %c0_i32 = arith.constant 0 : i32
    %c0_i32_0 = arith.constant 0 : i32
    %c0_i32_1 = arith.constant 0 : i32
    return %c0_i32, %c0_i32_0 : i32, i32
  }
  func.func @transform_2(%arg0: i32) -> (i32, i32) {
    %c0_i32 = arith.constant 0 : i32
    %c0_i32_0 = arith.constant 0 : i32
    %c0_i32_1 = arith.constant 0 : i32
    return %c0_i32, %c0_i32_0 : i32, i32
  }
  func.func @transform_3(%arg0: i32) -> (i32, i32) {
    %c0_i32 = arith.constant 0 : i32
    %c0_i32_0 = arith.constant 0 : i32
    %c0_i32_1 = arith.constant 0 : i32
    return %c0_i32, %c0_i32_0 : i32, i32
  }
  func.func @transform_4(%arg0: i32) -> (i32, i32) {
    %c0_i32 = arith.constant 0 : i32
    %c0_i32_0 = arith.constant 0 : i32
    %c0_i32_1 = arith.constant 0 : i32
    return %c0_i32, %c0_i32_0 : i32, i32
  }
  func.func @transform_5(%arg0: i32) -> (i32, i32) {
    %c0_i32 = arith.constant 0 : i32
    %c0_i32_0 = arith.constant 0 : i32
    return %arg0, %c0_i32 : i32, i32
  }
}

</mosaic_0001>

<llo_original>
// kernel: _lambda_.1
$region0: #{_lambda_.1}
  #allocation0 [shape = 'u32[]', space=smem, size = 0x4, offset = 0x4, fixed_abs, tag = 'smem constant byte address 0x4 - core index']
  #allocation1 [shape = 'u32[144,128]{1,0:T(1,128)}', space=vmem, size = 0x12000, scoped, tag = 'internal scratch']
  %s0 = inlined_call_operand.vmem [shape: f32[256,11], index: 0, kind: input, shape index: {}]
  %s1 = inlined_call_operand.vmem [shape: f32[11,32], index: 1, kind: input, shape index: {}]
  %s2 = inlined_call_operand.vmem [shape: f32[1,32], index: 2, kind: input, shape index: {}]
  %s3 = inlined_call_operand.vmem [shape: f32[32,128], index: 3, kind: input, shape index: {}]
  %s4 = inlined_call_operand.vmem [shape: f32[1,128], index: 4, kind: input, shape index: {}]
  %s5 = inlined_call_operand.vmem [shape: f32[256,128], index: 5, kind: output, shape index: {}]
  %s6 = sld [smem:[#allocation0]]
  $region30: #{_lambda_.1} parent=0
    _
  %s8 = ssub.s32 1, %s6
  %s9 = scalar_select 0, %s8, %s6
  // Predicated region
  $region2: #{_lambda_.1} parent=0 // pred_check
    _
  $region3: #{_lambda_.1} parent=0 // pred_check_branch
    %11 = sbr.rel (0) target = $region5
  $region4: #{_lambda_.1} parent=0 // pred_region
    _
  $region5: #{_lambda_.1} parent=0 // pred_fallthru
    _
  // Predicated region
  $region6: #{_lambda_.1} parent=0 // pred_check
    _
  $region7: #{_lambda_.1} parent=0 // pred_check_branch
    %13 = sbr.rel (0) target = $region9
  $region8: #{_lambda_.1} parent=0 // pred_region
    _
  $region9: #{_lambda_.1} parent=0 // pred_fallthru
    _
  // Predicated region
  $region10: #{_lambda_.1} parent=0 // pred_check
    _
  $region11: #{_lambda_.1} parent=0 // pred_check_branch
    %15 = sbr.rel (0) target = $region13
  $region12: #{_lambda_.1} parent=0 // pred_region
    _
  $region13: #{_lambda_.1} parent=0 // pred_fallthru
    _
  // Predicated region
  $region14: #{_lambda_.1} parent=0 // pred_check
    _
  $region15: #{_lambda_.1} parent=0 // pred_check_branch
    %17 = sbr.rel (0) target = $region17
  $region16: #{_lambda_.1} parent=0 // pred_region
    _
  $region17: #{_lambda_.1} parent=0 // pred_fallthru
    _
  // Predicated region
  $region18: #{_lambda_.1} parent=0 // pred_check
    _
  $region19: #{_lambda_.1} parent=0 // pred_check_branch
    %19 = sbr.rel (0) target = $region21
  $region20: #{_lambda_.1} parent=0 // pred_region
    _
  $region21: #{_lambda_.1} parent=0 // pred_fallthru
    _
  %v20 = vld [vmem:[%s0] sm:$0xff]
  %v21 = vld [vmem:[%s0 + $0x8] sm:$0xff]
  %v22 = vld [vmem:[%s0 + $0x10] sm:$0xff]
  %v23 = vld [vmem:[%s0 + $0x18] sm:$0xff]
  %v24 = vld [vmem:[%s0 + $0x20] sm:$0xff]
  %v25 = vld [vmem:[%s0 + $0x28] sm:$0xff]
  %v26 = vld [vmem:[%s0 + $0x30] sm:$0xff]
  %v27 = vld [vmem:[%s0 + $0x38] sm:$0xff]
  %v28 = vld [vmem:[%s0 + $0x40] sm:$0xff]
  %v29 = vld [vmem:[%s0 + $0x48] sm:$0xff]
  %v30 = vld [vmem:[%s0 + $0x50] sm:$0xff]
  %v31 = vld [vmem:[%s0 + $0x58] sm:$0xff]
  %v32 = vld [vmem:[%s0 + $0x60] sm:$0xff]
  %v33 = vld [vmem:[%s0 + $0x68] sm:$0xff]
  %v34 = vld [vmem:[%s0 + $0x70] sm:$0xff]
  %v35 = vld [vmem:[%s0 + $0x78] sm:$0xff]
  %v36 = vld [vmem:[%s0 + $0x80] sm:$0xff]
  %v37 = vld [vmem:[%s0 + $0x88] sm:$0xff]
  %v38 = vld [vmem:[%s0 + $0x90] sm:$0xff]
  %v39 = vld [vmem:[%s0 + $0x98] sm:$0xff]
  %v40 = vld [vmem:[%s0 + $0xa0] sm:$0xff]
  %v41 = vld [vmem:[%s0 + $0xa8] sm:$0xff]
  %v42 = vld [vmem:[%s0 + $0xb0] sm:$0xff]
  %v43 = vld [vmem:[%s0 + $0xb8] sm:$0xff]
  %v44 = vld [vmem:[%s0 + $0xc0] sm:$0xff]
  %v45 = vld [vmem:[%s0 + $0xc8] sm:$0xff]
  %v46 = vld [vmem:[%s0 + $0xd0] sm:$0xff]
  %v47 = vld [vmem:[%s0 + $0xd8] sm:$0xff]
  %v48 = vld [vmem:[%s0 + $0xe0] sm:$0xff]
  %v49 = vld [vmem:[%s0 + $0xe8] sm:$0xff]
  %v50 = vld [vmem:[%s0 + $0xf0] sm:$0xff]
  %v51 = vld [vmem:[%s0 + $0xf8] sm:$0xff]
  %v52 = vld [vmem:[%s1] sm:$0xff]
  %v53 = vld [vmem:[%s1 + $0x8] sm:$0x7]
  %v54 = vld [vmem:[%s2] sm:$0x1]
  %v56 = vlaneseq
  %v57 = vshrl.u32 %v56, 7
  %v58 = vsub.s32 0, %v57
  %v59 = vrot.slane %v54, %v58
  %vm61 = vcmask 89088
  %v63 = vsel %vm61, %v20, 0
  %v66 = vsel %vm61, %v21, 0
  %v69 = vsel %vm61, %v22, 0
  %v72 = vsel %vm61, %v23, 0
  %v75 = vsel %vm61, %v24, 0
  %v78 = vsel %vm61, %v25, 0
  %v81 = vsel %vm61, %v26, 0
  %v84 = vsel %vm61, %v27, 0
  %v87 = vsel %vm61, %v28, 0
  %v90 = vsel %vm61, %v29, 0
  %v93 = vsel %vm61, %v30, 0
  %v96 = vsel %vm61, %v31, 0
  %v99 = vsel %vm61, %v32, 0
  %v102 = vsel %vm61, %v33, 0
  %v105 = vsel %vm61, %v34, 0
  %v108 = vsel %vm61, %v35, 0
  %v111 = vsel %vm61, %v36, 0
  %v114 = vsel %vm61, %v37, 0
  %v117 = vsel %vm61, %v38, 0
  %v120 = vsel %vm61, %v39, 0
  %v123 = vsel %vm61, %v40, 0
  %v126 = vsel %vm61, %v41, 0
  %v129 = vsel %vm61, %v42, 0
  %v132 = vsel %vm61, %v43, 0
  %v135 = vsel %vm61, %v44, 0
  %v138 = vsel %vm61, %v45, 0
  %v141 = vsel %vm61, %v46, 0
  %v144 = vsel %vm61, %v47, 0
  %v147 = vsel %vm61, %v48, 0
  %v150 = vsel %vm61, %v49, 0
  %v153 = vsel %vm61, %v50, 0
  %v156 = vsel %vm61, %v51, 0
  %vm158 = vcmask 1042432
  %v160 = vsel %vm158, %v53, 0
  %162 = vmatprep.subr.mxu0 0.0
  %163 = vmatpush1.msra.mxu0 %v52
  %164 = vmatprep.subr.mxu0 0.0
  %165 = vmatpush1.msra.mxu0 %v160
  %166 = vmatprep.subr.mxu0 0.0
  %167 = vmatpush1.msra.mxu0 0.0
  %168 = vmatprep.subr.mxu0 0.0
  %169 = vmatpush1.msra.mxu0 0.0
  %170 = vmatprep.subr.mxu0 0.0
  %171 = vmatpush1.msra.mxu0 0.0
  %172 = vmatprep.subr.mxu0 0.0
  %173 = vmatpush1.msra.mxu0 0.0
  %174 = vmatprep.subr.mxu0 0.0
  %175 = vmatpush1.msra.mxu0 0.0
  %176 = vmatprep.subr.mxu0 0.0
  %177 = vmatpush1.msra.mxu0 0.0
  %178 = vmatprep.subr.mxu0 0.0
  %179 = vmatpush1.msra.mxu0 0.0
  %180 = vmatprep.subr.mxu0 0.0
  %181 = vmatpush1.msra.mxu0 0.0
  %182 = vmatprep.subr.mxu0 0.0
  %183 = vmatpush1.msra.mxu0 0.0
  %184 = vmatprep.subr.mxu0 0.0
  %185 = vmatpush1.msra.mxu0 0.0
  %186 = vmatprep.subr.mxu0 0.0
  %187 = vmatpush1.msra.mxu0 0.0
  %188 = vmatprep.subr.mxu0 0.0
  %189 = vmatpush1.msra.mxu0 0.0
  %190 = vmatprep.subr.mxu0 0.0
  %191 = vmatpush1.msra.mxu0 0.0
  %192 = vmatprep.subr.mxu0 0.0
  %193 = vmatpush1.msra.mxu0 0.0
  %194 = vmatprep.subr.mxu0 0.0
  %195 = vmatpush1.msra.mxu0 0.0
  %196 = vmatprep.subr.mxu0 0.0
  %197 = vmatpush1.msra.mxu0 0.0
  %198 = vmatprep.subr.mxu0 0.0
  %199 = vmatpush1.msra.mxu0 0.0
  %200 = vmatprep.subr.mxu0 0.0
  %201 = vmatpush1.msra.mxu0 0.0
  %202 = vmatprep.subr.mxu0 0.0
  %203 = vmatpush1.msra.mxu0 0.0
  %204 = vmatprep.subr.mxu0 0.0
  %205 = vmatpush1.msra.mxu0 0.0
  %206 = vmatprep.subr.mxu0 0.0
  %207 = vmatpush1.msra.mxu0 0.0
  %208 = vmatprep.subr.mxu0 0.0
  %209 = vmatpush1.msra.mxu0 0.0
  %210 = vmatprep.subr.mxu0 0.0
  %211 = vmatpush1.msra.mxu0 0.0
  %212 = vmatprep.subr.mxu0 0.0
  %213 = vmatpush1.msra.mxu0 0.0
  %214 = vmatprep.subr.mxu0 0.0
  %215 = vmatpush1.msra.mxu0 0.0
  %216 = vmatprep.subr.mxu0 0.0
  %217 = vmatpush1.msra.mxu0 0.0
  %218 = vmatprep.subr.mxu0 0.0
  %219 = vmatpush1.msra.mxu0 0.0
  %220 = vmatprep.subr.mxu0 0.0
  %221 = vmatpush1.msra.mxu0 0.0
  %222 = vmatprep.subr.mxu0 0.0
  %223 = vmatpush1.msra.mxu0 0.0
  %224 = vmatprep.subr.mxu0 0.0
  %225 = vmatpush1.msra.mxu0 0.0
  %226 = vmatprep.mubr.f32.mxu0 0.0
  %227 = vmatmul.mubr.f32.gmra.mrb[0].mxu0 %v63
  %v228 = vpop.f32.mrb[0].mxu0
  %v229 = vadd.f32 %v59, %v228
  %v230 = vpop.f32.mrb[0].mxu0
  %231 = vmatprep.mubr.f32.mxu0 0.0
  %232 = vmatmul.mubr.f32.gmra.mrb[0].mxu0 %v66
  %v233 = vpop.f32.mrb[0].mxu0
  %v234 = vadd.f32 %v59, %v233
  %v235 = vpop.f32.mrb[0].mxu0
  %236 = vmatprep.mubr.f32.mxu0 0.0
  %237 = vmatmul.mubr.f32.gmra.mrb[0].mxu0 %v69
  %v238 = vpop.f32.mrb[0].mxu0
  %v239 = vadd.f32 %v59, %v238
  %v240 = vpop.f32.mrb[0].mxu0
  %241 = vmatprep.mubr.f32.mxu0 0.0
  %242 = vmatmul.mubr.f32.gmra.mrb[0].mxu0 %v72
  %v243 = vpop.f32.mrb[0].mxu0
  %v244 = vadd.f32 %v59, %v243
  %v245 = vpop.f32.mrb[0].mxu0
  %246 = vmatprep.mubr.f32.mxu0 0.0
  %247 = vmatmul.mubr.f32.gmra.mrb[0].mxu0 %v75
  %v248 = vpop.f32.mrb[0].mxu0
  %v249 = vadd.f32 %v59, %v248
  %v250 = vpop.f32.mrb[0].mxu0
  %251 = vmatprep.mubr.f32.mxu0 0.0
  %252 = vmatmul.mubr.f32.gmra.mrb[0].mxu0 %v78
  %v253 = vpop.f32.mrb[0].mxu0
  %v254 = vadd.f32 %v59, %v253
  %v255 = vpop.f32.mrb[0].mxu0
  %256 = vmatprep.mubr.f32.mxu0 0.0
  %257 = vmatmul.mubr.f32.gmra.mrb[0].mxu0 %v81
  %v258 = vpop.f32.mrb[0].mxu0
  %v259 = vadd.f32 %v59, %v258
  %v260 = vpop.f32.mrb[0].mxu0
  %261 = vmatprep.mubr.f32.mxu0 0.0
  %262 = vmatmul.mubr.f32.gmra.mrb[0].mxu0 %v84
  %v263 = vpop.f32.mrb[0].mxu0
  %v264 = vadd.f32 %v59, %v263
  %v265 = vpop.f32.mrb[0].mxu0
  %266 = vmatprep.mubr.f32.mxu0 0.0
  %267 = vmatmul.mubr.f32.gmra.mrb[0].mxu0 %v87
  %v268 = vpop.f32.mrb[0].mxu0
  %v269 = vadd.f32 %v59, %v268
  %v270 = vpop.f32.mrb[0].mxu0
  %271 = vmatprep.mubr.f32.mxu0 0.0
  %272 = vmatmul.mubr.f32.gmra.mrb[0].mxu0 %v90
  %v273 = vpop.f32.mrb[0].mxu0
  %v274 = vadd.f32 %v59, %v273
  %v275 = vpop.f32.mrb[0].mxu0
  %276 = vmatprep.mubr.f32.mxu0 0.0
  %277 = vmatmul.mubr.f32.gmra.mrb[0].mxu0 %v93
  %v278 = vpop.f32.mrb[0].mxu0
  %v279 = vadd.f32 %v59, %v278
  %v280 = vpop.f32.mrb[0].mxu0
  %281 = vmatprep.mubr.f32.mxu0 0.0
  %282 = vmatmul.mubr.f32.gmra.mrb[0].mxu0 %v96
  %v283 = vpop.f32.mrb[0].mxu0
  %v284 = vadd.f32 %v59, %v283
  %v285 = vpop.f32.mrb[0].mxu0
  %286 = vmatprep.mubr.f32.mxu0 0.0
  %287 = vmatmul.mubr.f32.gmra.mrb[0].mxu0 %v99
  %v288 = vpop.f32.mrb[0].mxu0
  %v289 = vadd.f32 %v59, %v288
  %v290 = vpop.f32.mrb[0].mxu0
  %291 = vmatprep.mubr.f32.mxu0 0.0
  %292 = vmatmul.mubr.f32.gmra.mrb[0].mxu0 %v102
  %v293 = vpop.f32.mrb[0].mxu0
  %v294 = vadd.f32 %v59, %v293
  %v295 = vpop.f32.mrb[0].mxu0
  %296 = vmatprep.mubr.f32.mxu0 0.0
  %297 = vmatmul.mubr.f32.gmra.mrb[0].mxu0 %v105
  %v298 = vpop.f32.mrb[0].mxu0
  %v299 = vadd.f32 %v59, %v298
  %v300 = vpop.f32.mrb[0].mxu0
  %301 = vmatprep.mubr.f32.mxu0 0.0
  %302 = vmatmul.mubr.f32.gmra.mrb[0].mxu0 %v108
  %v303 = vpop.f32.mrb[0].mxu0
  %v304 = vadd.f32 %v59, %v303
  %v305 = vpop.f32.mrb[0].mxu0
  %306 = vmatprep.mubr.f32.mxu0 0.0
  %307 = vmatmul.mubr.f32.gmra.mrb[0].mxu0 %v111
  %v308 = vpop.f32.mrb[0].mxu0
  %v309 = vadd.f32 %v59, %v308
  %v310 = vpop.f32.mrb[0].mxu0
  %311 = vmatprep.mubr.f32.mxu0 0.0
  %312 = vmatmul.mubr.f32.gmra.mrb[0].mxu0 %v114
  %v313 = vpop.f32.mrb[0].mxu0
  %v314 = vadd.f32 %v59, %v313
  %v315 = vpop.f32.mrb[0].mxu0
  %316 = vmatprep.mubr.f32.mxu0 0.0
  %317 = vmatmul.mubr.f32.gmra.mrb[0].mxu0 %v117
  %v318 = vpop.f32.mrb[0].mxu0
  %v319 = vadd.f32 %v59, %v318
  %v320 = vpop.f32.mrb[0].mxu0
  %321 = vmatprep.mubr.f32.mxu0 0.0
  %322 = vmatmul.mubr.f32.gmra.mrb[0].mxu0 %v120
  %v323 = vpop.f32.mrb[0].mxu0
  %v324 = vadd.f32 %v59, %v323
  %v325 = vpop.f32.mrb[0].mxu0
  %326 = vmatprep.mubr.f32.mxu0 0.0
  %327 = vmatmul.mubr.f32.gmra.mrb[0].mxu0 %v123
  %v328 = vpop.f32.mrb[0].mxu0
  %v329 = vadd.f32 %v59, %v328
  %v330 = vpop.f32.mrb[0].mxu0
  %331 = vmatprep.mubr.f32.mxu0 0.0
  %332 = vmatmul.mubr.f32.gmra.mrb[0].mxu0 %v126
  %v333 = vpop.f32.mrb[0].mxu0
  %v334 = vadd.f32 %v59, %v333
  %v335 = vpop.f32.mrb[0].mxu0
  %336 = vmatprep.mubr.f32.mxu0 0.0
  %337 = vmatmul.mubr.f32.gmra.mrb[0].mxu0 %v129
  %v338 = vpop.f32.mrb[0].mxu0
  %v339 = vadd.f32 %v59, %v338
  %v340 = vpop.f32.mrb[0].mxu0
  %341 = vmatprep.mubr.f32.mxu0 0.0
  %342 = vmatmul.mubr.f32.gmra.mrb[0].mxu0 %v132
  %v343 = vpop.f32.mrb[0].mxu0
  %v344 = vadd.f32 %v59, %v343
  %v345 = vpop.f32.mrb[0].mxu0
  %346 = vmatprep.mubr.f32.mxu0 0.0
  %347 = vmatmul.mubr.f32.gmra.mrb[0].mxu0 %v135
  %v348 = vpop.f32.mrb[0].mxu0
  %v349 = vadd.f32 %v59, %v348
  %v350 = vpop.f32.mrb[0].mxu0
  %351 = vmatprep.mubr.f32.mxu0 0.0
  %352 = vmatmul.mubr.f32.gmra.mrb[0].mxu0 %v138
  %v353 = vpop.f32.mrb[0].mxu0
  %v354 = vadd.f32 %v59, %v353
  %v355 = vpop.f32.mrb[0].mxu0
  %356 = vmatprep.mubr.f32.mxu0 0.0
  %357 = vmatmul.mubr.f32.gmra.mrb[0].mxu0 %v141
  %v358 = vpop.f32.mrb[0].mxu0
  %v359 = vadd.f32 %v59, %v358
  %v360 = vpop.f32.mrb[0].mxu0
  %361 = vmatprep.mubr.f32.mxu0 0.0
  %362 = vmatmul.mubr.f32.gmra.mrb[0].mxu0 %v144
  %v363 = vpop.f32.mrb[0].mxu0
  %v364 = vadd.f32 %v59, %v363
  %v365 = vpop.f32.mrb[0].mxu0
  %366 = vmatprep.mubr.f32.mxu0 0.0
  %367 = vmatmul.mubr.f32.gmra.mrb[0].mxu0 %v147
  %v368 = vpop.f32.mrb[0].mxu0
  %v369 = vadd.f32 %v59, %v368
  %v370 = vpop.f32.mrb[0].mxu0
  %371 = vmatprep.mubr.f32.mxu0 0.0
  %372 = vmatmul.mubr.f32.gmra.mrb[0].mxu0 %v150
  %v373 = vpop.f32.mrb[0].mxu0
  %v374 = vadd.f32 %v59, %v373
  %v375 = vpop.f32.mrb[0].mxu0
  %376 = vmatprep.mubr.f32.mxu0 0.0
  %377 = vmatmul.mubr.f32.gmra.mrb[0].mxu0 %v153
  %v378 = vpop.f32.mrb[0].mxu0
  %v379 = vadd.f32 %v59, %v378
  %v380 = vpop.f32.mrb[0].mxu0
  %381 = vmatprep.mubr.f32.mxu0 0.0
  %382 = vmatmul.mubr.f32.gmra.mrb[0].mxu0 %v156
  %v383 = vpop.f32.mrb[0].mxu0
  %v384 = vadd.f32 %v59, %v383
  %v385 = vpop.f32.mrb[0].mxu0
  %386 = vdwg.mxu0
  %v387 = vmax.f32 %v229, 0.0
  %v388 = vmax.f32 %v234, 0.0
  %v389 = vmax.f32 %v239, 0.0
  %v390 = vmax.f32 %v244, 0.0
  %v391 = vmax.f32 %v249, 0.0
  %v392 = vmax.f32 %v254, 0.0
  %v393 = vmax.f32 %v259, 0.0
  %v394 = vmax.f32 %v264, 0.0
  %v395 = vmax.f32 %v269, 0.0
  %v396 = vmax.f32 %v274, 0.0
  %v397 = vmax.f32 %v279, 0.0
  %v398 = vmax.f32 %v284, 0.0
  %v399 = vmax.f32 %v289, 0.0
  %v400 = vmax.f32 %v294, 0.0
  %v401 = vmax.f32 %v299, 0.0
  %v402 = vmax.f32 %v304, 0.0
  %v403 = vmax.f32 %v309, 0.0
  %v404 = vmax.f32 %v314, 0.0
  %v405 = vmax.f32 %v319, 0.0
  %v406 = vmax.f32 %v324, 0.0
  %v407 = vmax.f32 %v329, 0.0
  %v408 = vmax.f32 %v334, 0.0
  %v409 = vmax.f32 %v339, 0.0
  %v410 = vmax.f32 %v344, 0.0
  %v411 = vmax.f32 %v349, 0.0
  %v412 = vmax.f32 %v354, 0.0
  %v413 = vmax.f32 %v359, 0.0
  %v414 = vmax.f32 %v364, 0.0
  %v415 = vmax.f32 %v369, 0.0
  %v416 = vmax.f32 %v374, 0.0
  %v417 = vmax.f32 %v379, 0.0
  %v418 = vmax.f32 %v384, 0.0
  %v419 = vld [vmem:[%s3] sm:$0xff]
  %v420 = vld [vmem:[%s3 + $0x8] sm:$0xff]
  %v421 = vld [vmem:[%s3 + $0x10] sm:$0xff]
  %v422 = vld [vmem:[%s3 + $0x18] sm:$0xff]
  %v423 = vld [vmem:[%s4] sm:$0x1]
  %v425 = vlaneseq
  %v426 = vshrl.u32 %v425, 7
  %v427 = vsub.s32 0, %v426
  %v428 = vrot.slane %v423, %v427
  %vm430 = vcmask 261120
  %v432 = vsel %vm430, %v387, 0
  %v435 = vsel %vm430, %v388, 0
  %v438 = vsel %vm430, %v389, 0
  %v441 = vsel %vm430, %v390, 0
  %v444 = vsel %vm430, %v391, 0
  %v447 = vsel %vm430, %v392, 0
  %v450 = vsel %vm430, %v393, 0
  %v453 = vsel %vm430, %v394, 0
  %v456 = vsel %vm430, %v395, 0
  %v459 = vsel %vm430, %v396, 0
  %v462 = vsel %vm430, %v397, 0
  %v465 = vsel %vm430, %v398, 0
  %v468 = vsel %vm430, %v399, 0
  %v471 = vsel %vm430, %v400, 0
  %v474 = vsel %vm430, %v401, 0
  %v477 = vsel %vm430, %v402, 0
  %v480 = vsel %vm430, %v403, 0
  %v483 = vsel %vm430, %v404, 0
  %v486 = vsel %vm430, %v405, 0
  %v489 = vsel %vm430, %v406, 0
  %v492 = vsel %vm430, %v407, 0
  %v495 = vsel %vm430, %v408, 0
  %v498 = vsel %vm430, %v409, 0
  %v501 = vsel %vm430, %v410, 0
  %v504 = vsel %vm430, %v411, 0
  %v507 = vsel %vm430, %v412, 0
  %v510 = vsel %vm430, %v413, 0
  %v513 = vsel %vm430, %v414, 0
  %v516 = vsel %vm430, %v415, 0
  %v519 = vsel %vm430, %v416, 0
  %v522 = vsel %vm430, %v417, 0
  %v525 = vsel %vm430, %v418, 0
  %527 = vmatprep.subr.mxu0 0.0
  %528 = vmatpush1.msra.mxu0 %v419
  %529 = vmatprep.subr.mxu0 0.0
  %530 = vmatpush1.msra.mxu0 %v420
  %531 = vmatprep.subr.mxu0 0.0
  %532 = vmatpush1.msra.mxu0 %v421
  %533 = vmatprep.subr.mxu0 0.0
  %534 = vmatpush1.msra.mxu0 %v422
  %535 = vmatprep.subr.mxu0 0.0
  %536 = vmatpush1.msra.mxu0 0.0
  %537 = vmatprep.subr.mxu0 0.0
  %538 = vmatpush1.msra.mxu0 0.0
  %539 = vmatprep.subr.mxu0 0.0
  %540 = vmatpush1.msra.mxu0 0.0
  %541 = vmatprep.subr.mxu0 0.0
  %542 = vmatpush1.msra.mxu0 0.0
  %543 = vmatprep.subr.mxu0 0.0
  %544 = vmatpush1.msra.mxu0 0.0
  %545 = vmatprep.subr.mxu0 0.0
  %546 = vmatpush1.msra.mxu0 0.0
  %547 = vmatprep.subr.mxu0 0.0
  %548 = vmatpush1.msra.mxu0 0.0
  %549 = vmatprep.subr.mxu0 0.0
  %550 = vmatpush1.msra.mxu0 0.0
  %551 = vmatprep.subr.mxu0 0.0
  %552 = vmatpush1.msra.mxu0 0.0
  %553 = vmatprep.subr.mxu0 0.0
  %554 = vmatpush1.msra.mxu0 0.0
  %555 = vmatprep.subr.mxu0 0.0
  %556 = vmatpush1.msra.mxu0 0.0
  %557 = vmatprep.subr.mxu0 0.0
  %558 = vmatpush1.msra.mxu0 0.0
  %559 = vmatprep.subr.mxu0 0.0
  %560 = vmatpush1.msra.mxu0 0.0
  %561 = vmatprep.subr.mxu0 0.0
  %562 = vmatpush1.msra.mxu0 0.0
  %563 = vmatprep.subr.mxu0 0.0
  %564 = vmatpush1.msra.mxu0 0.0
  %565 = vmatprep.subr.mxu0 0.0
  %566 = vmatpush1.msra.mxu0 0.0
  %567 = vmatprep.subr.mxu0 0.0
  %568 = vmatpush1.msra.mxu0 0.0
  %569 = vmatprep.subr.mxu0 0.0
  %570 = vmatpush1.msra.mxu0 0.0
  %571 = vmatprep.subr.mxu0 0.0
  %572 = vmatpush1.msra.mxu0 0.0
  %573 = vmatprep.subr.mxu0 0.0
  %574 = vmatpush1.msra.mxu0 0.0
  %575 = vmatprep.subr.mxu0 0.0
  %576 = vmatpush1.msra.mxu0 0.0
  %577 = vmatprep.subr.mxu0 0.0
  %578 = vmatpush1.msra.mxu0 0.0
  %579 = vmatprep.subr.mxu0 0.0
  %580 = vmatpush1.msra.mxu0 0.0
  %581 = vmatprep.subr.mxu0 0.0
  %582 = vmatpush1.msra.mxu0 0.0
  %583 = vmatprep.subr.mxu0 0.0
  %584 = vmatpush1.msra.mxu0 0.0
  %585 = vmatprep.subr.mxu0 0.0
  %586 = vmatpush1.msra.mxu0 0.0
  %587 = vmatprep.subr.mxu0 0.0
  %588 = vmatpush1.msra.mxu0 0.0
  %589 = vmatprep.subr.mxu0 0.0
  %590 = vmatpush1.msra.mxu0 0.0
  %591 = vmatprep.mubr.f32.mxu0 0.0
  %592 = vmatmul.mubr.f32.gmra.mrb[0].mxu0 %v432
  %v593 = vpop.f32.mrb[0].mxu0
  %v594 = vadd.f32 %v428, %v593
  %v595 = vpop.f32.mrb[0].mxu0
  %596 = vmatprep.mubr.f32.mxu0 0.0
  %597 = vmatmul.mubr.f32.gmra.mrb[0].mxu0 %v435
  %v598 = vpop.f32.mrb[0].mxu0
  %v599 = vadd.f32 %v428, %v598
  %v600 = vpop.f32.mrb[0].mxu0
  %601 = vmatprep.mubr.f32.mxu0 0.0
  %602 = vmatmul.mubr.f32.gmra.mrb[0].mxu0 %v438
  %v603 = vpop.f32.mrb[0].mxu0
  %v604 = vadd.f32 %v428, %v603
  %v605 = vpop.f32.mrb[0].mxu0
  %606 = vmatprep.mubr.f32.mxu0 0.0
  %607 = vmatmul.mubr.f32.gmra.mrb[0].mxu0 %v441
  %v608 = vpop.f32.mrb[0].mxu0
  %v609 = vadd.f32 %v428, %v608
  %v610 = vpop.f32.mrb[0].mxu0
  %611 = vmatprep.mubr.f32.mxu0 0.0
  %612 = vmatmul.mubr.f32.gmra.mrb[0].mxu0 %v444
  %v613 = vpop.f32.mrb[0].mxu0
  %v614 = vadd.f32 %v428, %v613
  %v615 = vpop.f32.mrb[0].mxu0
  %616 = vmatprep.mubr.f32.mxu0 0.0
  %617 = vmatmul.mubr.f32.gmra.mrb[0].mxu0 %v447
  %v618 = vpop.f32.mrb[0].mxu0
  %v619 = vadd.f32 %v428, %v618
  %v620 = vpop.f32.mrb[0].mxu0
  %621 = vmatprep.mubr.f32.mxu0 0.0
  %622 = vmatmul.mubr.f32.gmra.mrb[0].mxu0 %v450
  %v623 = vpop.f32.mrb[0].mxu0
  %v624 = vadd.f32 %v428, %v623
  %v625 = vpop.f32.mrb[0].mxu0
  %626 = vmatprep.mubr.f32.mxu0 0.0
  %627 = vmatmul.mubr.f32.gmra.mrb[0].mxu0 %v453
  %v628 = vpop.f32.mrb[0].mxu0
  %v629 = vadd.f32 %v428, %v628
  %v630 = vpop.f32.mrb[0].mxu0
  %631 = vmatprep.mubr.f32.mxu0 0.0
  %632 = vmatmul.mubr.f32.gmra.mrb[0].mxu0 %v456
  %v633 = vpop.f32.mrb[0].mxu0
  %v634 = vadd.f32 %v428, %v633
  %v635 = vpop.f32.mrb[0].mxu0
  %636 = vmatprep.mubr.f32.mxu0 0.0
  %637 = vmatmul.mubr.f32.gmra.mrb[0].mxu0 %v459
  %v638 = vpop.f32.mrb[0].mxu0
  %v639 = vadd.f32 %v428, %v638
  %v640 = vpop.f32.mrb[0].mxu0
  %641 = vmatprep.mubr.f32.mxu0 0.0
  %642 = vmatmul.mubr.f32.gmra.mrb[0].mxu0 %v462
  %v643 = vpop.f32.mrb[0].mxu0
  %v644 = vadd.f32 %v428, %v643
  %v645 = vpop.f32.mrb[0].mxu0
  %646 = vmatprep.mubr.f32.mxu0 0.0
  %647 = vmatmul.mubr.f32.gmra.mrb[0].mxu0 %v465
  %v648 = vpop.f32.mrb[0].mxu0
  %v649 = vadd.f32 %v428, %v648
  %v650 = vpop.f32.mrb[0].mxu0
  %651 = vmatprep.mubr.f32.mxu0 0.0
  %652 = vmatmul.mubr.f32.gmra.mrb[0].mxu0 %v468
  %v653 = vpop.f32.mrb[0].mxu0
  %v654 = vadd.f32 %v428, %v653
  %v655 = vpop.f32.mrb[0].mxu0
  %656 = vmatprep.mubr.f32.mxu0 0.0
  %657 = vmatmul.mubr.f32.gmra.mrb[0].mxu0 %v471
  %v658 = vpop.f32.mrb[0].mxu0
  %v659 = vadd.f32 %v428, %v658
  %v660 = vpop.f32.mrb[0].mxu0
  %661 = vmatprep.mubr.f32.mxu0 0.0
  %662 = vmatmul.mubr.f32.gmra.mrb[0].mxu0 %v474
  %v663 = vpop.f32.mrb[0].mxu0
  %v664 = vadd.f32 %v428, %v663
  %v665 = vpop.f32.mrb[0].mxu0
  %666 = vmatprep.mubr.f32.mxu0 0.0
  %667 = vmatmul.mubr.f32.gmra.mrb[0].mxu0 %v477
  %v668 = vpop.f32.mrb[0].mxu0
  %v669 = vadd.f32 %v428, %v668
  %v670 = vpop.f32.mrb[0].mxu0
  %671 = vmatprep.mubr.f32.mxu0 0.0
  %672 = vmatmul.mubr.f32.gmra.mrb[0].mxu0 %v480
  %v673 = vpop.f32.mrb[0].mxu0
  %v674 = vadd.f32 %v428, %v673
  %v675 = vpop.f32.mrb[0].mxu0
  %676 = vmatprep.mubr.f32.mxu0 0.0
  %677 = vmatmul.mubr.f32.gmra.mrb[0].mxu0 %v483
  %v678 = vpop.f32.mrb[0].mxu0
  %v679 = vadd.f32 %v428, %v678
  %v680 = vpop.f32.mrb[0].mxu0
  %681 = vmatprep.mubr.f32.mxu0 0.0
  %682 = vmatmul.mubr.f32.gmra.mrb[0].mxu0 %v486
  %v683 = vpop.f32.mrb[0].mxu0
  %v684 = vadd.f32 %v428, %v683
  %v685 = vpop.f32.mrb[0].mxu0
  %686 = vmatprep.mubr.f32.mxu0 0.0
  %687 = vmatmul.mubr.f32.gmra.mrb[0].mxu0 %v489
  %v688 = vpop.f32.mrb[0].mxu0
  %v689 = vadd.f32 %v428, %v688
  %v690 = vpop.f32.mrb[0].mxu0
  %691 = vmatprep.mubr.f32.mxu0 0.0
  %692 = vmatmul.mubr.f32.gmra.mrb[0].mxu0 %v492
  %v693 = vpop.f32.mrb[0].mxu0
  %v694 = vadd.f32 %v428, %v693
  %v695 = vpop.f32.mrb[0].mxu0
  %696 = vmatprep.mubr.f32.mxu0 0.0
  %697 = vmatmul.mubr.f32.gmra.mrb[0].mxu0 %v495
  %v698 = vpop.f32.mrb[0].mxu0
  %v699 = vadd.f32 %v428, %v698
  %v700 = vpop.f32.mrb[0].mxu0
  %701 = vmatprep.mubr.f32.mxu0 0.0
  %702 = vmatmul.mubr.f32.gmra.mrb[0].mxu0 %v498
  %v703 = vpop.f32.mrb[0].mxu0
  %v704 = vadd.f32 %v428, %v703
  %v705 = vpop.f32.mrb[0].mxu0
  %706 = vmatprep.mubr.f32.mxu0 0.0
  %707 = vmatmul.mubr.f32.gmra.mrb[0].mxu0 %v501
  %v708 = vpop.f32.mrb[0].mxu0
  %v709 = vadd.f32 %v428, %v708
  %v710 = vpop.f32.mrb[0].mxu0
  %711 = vmatprep.mubr.f32.mxu0 0.0
  %712 = vmatmul.mubr.f32.gmra.mrb[0].mxu0 %v504
  %v713 = vpop.f32.mrb[0].mxu0
  %v714 = vadd.f32 %v428, %v713
  %v715 = vpop.f32.mrb[0].mxu0
  %716 = vmatprep.mubr.f32.mxu0 0.0
  %717 = vmatmul.mubr.f32.gmra.mrb[0].mxu0 %v507
  %v718 = vpop.f32.mrb[0].mxu0
  %v719 = vadd.f32 %v428, %v718
  %v720 = vpop.f32.mrb[0].mxu0
  %721 = vmatprep.mubr.f32.mxu0 0.0
  %722 = vmatmul.mubr.f32.gmra.mrb[0].mxu0 %v510
  %v723 = vpop.f32.mrb[0].mxu0
  %v724 = vadd.f32 %v428, %v723
  %v725 = vpop.f32.mrb[0].mxu0
  %726 = vmatprep.mubr.f32.mxu0 0.0
  %727 = vmatmul.mubr.f32.gmra.mrb[0].mxu0 %v513
  %v728 = vpop.f32.mrb[0].mxu0
  %v729 = vadd.f32 %v428, %v728
  %v730 = vpop.f32.mrb[0].mxu0
  %731 = vmatprep.mubr.f32.mxu0 0.0
  %732 = vmatmul.mubr.f32.gmra.mrb[0].mxu0 %v516
  %v733 = vpop.f32.mrb[0].mxu0
  %v734 = vadd.f32 %v428, %v733
  %v735 = vpop.f32.mrb[0].mxu0
  %736 = vmatprep.mubr.f32.mxu0 0.0
  %737 = vmatmul.mubr.f32.gmra.mrb[0].mxu0 %v519
  %v738 = vpop.f32.mrb[0].mxu0
  %v739 = vadd.f32 %v428, %v738
  %v740 = vpop.f32.mrb[0].mxu0
  %741 = vmatprep.mubr.f32.mxu0 0.0
  %742 = vmatmul.mubr.f32.gmra.mrb[0].mxu0 %v522
  %v743 = vpop.f32.mrb[0].mxu0
  %v744 = vadd.f32 %v428, %v743
  %v745 = vpop.f32.mrb[0].mxu0
  %746 = vmatprep.mubr.f32.mxu0 0.0
  %747 = vmatmul.mubr.f32.gmra.mrb[0].mxu0 %v525
  %v748 = vpop.f32.mrb[0].mxu0
  %v749 = vadd.f32 %v428, %v748
  %v750 = vpop.f32.mrb[0].mxu0
  %751 = vdwg.mxu0
  %752 = vst [vmem:[%s5] sm:$0xff] %v594
  %753 = vst [vmem:[%s5 + $0x8] sm:$0xff] %v599
  %754 = vst [vmem:[%s5 + $0x10] sm:$0xff] %v604
  %755 = vst [vmem:[%s5 + $0x18] sm:$0xff] %v609
  %756 = vst [vmem:[%s5 + $0x20] sm:$0xff] %v614
  %757 = vst [vmem:[%s5 + $0x28] sm:$0xff] %v619
  %758 = vst [vmem:[%s5 + $0x30] sm:$0xff] %v624
  %759 = vst [vmem:[%s5 + $0x38] sm:$0xff] %v629
  %760 = vst [vmem:[%s5 + $0x40] sm:$0xff] %v634
  %761 = vst [vmem:[%s5 + $0x48] sm:$0xff] %v639
  %762 = vst [vmem:[%s5 + $0x50] sm:$0xff] %v644
  %763 = vst [vmem:[%s5 + $0x58] sm:$0xff] %v649
  %764 = vst [vmem:[%s5 + $0x60] sm:$0xff] %v654
  %765 = vst [vmem:[%s5 + $0x68] sm:$0xff] %v659
  %766 = vst [vmem:[%s5 + $0x70] sm:$0xff] %v664
  %767 = vst [vmem:[%s5 + $0x78] sm:$0xff] %v669
  %768 = vst [vmem:[%s5 + $0x80] sm:$0xff] %v674
  %769 = vst [vmem:[%s5 + $0x88] sm:$0xff] %v679
  %770 = vst [vmem:[%s5 + $0x90] sm:$0xff] %v684
  %771 = vst [vmem:[%s5 + $0x98] sm:$0xff] %v689
  %772 = vst [vmem:[%s5 + $0xa0] sm:$0xff] %v694
  %773 = vst [vmem:[%s5 + $0xa8] sm:$0xff] %v699
  %774 = vst [vmem:[%s5 + $0xb0] sm:$0xff] %v704
  %775 = vst [vmem:[%s5 + $0xb8] sm:$0xff] %v709
  %776 = vst [vmem:[%s5 + $0xc0] sm:$0xff] %v714
  %777 = vst [vmem:[%s5 + $0xc8] sm:$0xff] %v719
  %778 = vst [vmem:[%s5 + $0xd0] sm:$0xff] %v724
  %779 = vst [vmem:[%s5 + $0xd8] sm:$0xff] %v729
  %780 = vst [vmem:[%s5 + $0xe0] sm:$0xff] %v734
  %781 = vst [vmem:[%s5 + $0xe8] sm:$0xff] %v739
  %782 = vst [vmem:[%s5 + $0xf0] sm:$0xff] %v744
  %783 = vst [vmem:[%s5 + $0xf8] sm:$0xff] %v749
  // Predicated region
  $region22: #{_lambda_.1} parent=0 // pred_check
    _
  $region23: #{_lambda_.1} parent=0 // pred_check_branch
    %785 = sbr.rel (0) target = $region25
  $region24: #{_lambda_.1} parent=0 // pred_region
    _
  $region25: #{_lambda_.1} parent=0 // pred_fallthru
    _
  // Predicated region
  $region26: #{_lambda_.1} parent=0 // pred_check
    _
  $region27: #{_lambda_.1} parent=0 // pred_check_branch
    %787 = sbr.rel (0) target = $region29
  $region28: #{_lambda_.1} parent=0 // pred_region
    _
  $region29: #{_lambda_.1} parent=0 // pred_fallthru
    _

</llo_original>
